<compile_context>
chip_gen: v7x
topology: tpu7x:2x2x1
jax: 0.10.0
libtpu: 0.0.40
codegen_flags: <defaults>
</compile_context>

<pallas_src>
import functools

import jax
import jax.numpy as jnp
from jax import lax
from jax.experimental import pallas as pl
from jax.experimental.pallas import tpu as pltpu


# --------------------------------------------------------------------------
# Fused kernel: one grid step == Bb batch elements
# --------------------------------------------------------------------------
def _attention_kernel(enc_ref, att2_ref, we_ref, wf_ref, awe_ref, alpha_ref,
                      *, block_b):
    # enc_ref  : (Bb, P, E) bf16  encoder features for this batch block
    # att2_ref : (Bb, 1, A) f32   decoder projection + (be + bd), precomputed
    # we_ref   : (E, A)     bf16  encoder_att weight (in, out), block-resident
    # wf_ref   : (1, A)     f32   full_att weight as a lane row
    # awe_ref  : (Bb, 1, E) f32   attention-weighted encoding
    # alpha_ref: (Bb, 1, P) f32   attention weights (P on the lane axis)
    we = we_ref[...]
    wf = wf_ref[...]

    for b in range(block_b):                      # static unroll, Bb is small
        enc_b = enc_ref[b]                        # (P, E) bf16

        # encoder projection on the MXU, f32 accumulation
        att1 = jnp.dot(enc_b, we, preferred_element_type=jnp.float32)  # (P, A)
        t = jnp.tanh(att1 + att2_ref[b])          # (P, A) f32, tanh on the EUP

        # full_att: contract the A (lane) axis of both operands on the MXU so
        # the scores land lane-major as a (1, P) row (lane-dense epilogue).
        att_row = lax.dot_general(
            wf, t, (((1,), (1,)), ((), ())),
            preferred_element_type=jnp.float32)   # (1, P)

        # softmax over pixels (lane axis). full_att bias omitted: it is a
        # constant shift and cancels in the softmax.
        m = jnp.max(att_row, axis=-1, keepdims=True)
        e_row = jnp.exp(att_row - m)              # (1, P)
        s = jnp.sum(e_row, axis=-1, keepdims=True)
        inv_s = pl.reciprocal(s, approx=True)     # EUP, deferred normalization

        # attention-weighted encoding on the MXU: (1, P) @ (P, E), f32 acc
        awe = jnp.dot(e_row.astype(jnp.bfloat16), enc_b,
                      preferred_element_type=jnp.float32) * inv_s      # (1, E)

        awe_ref[b] = awe
        alpha_ref[b] = e_row * inv_s


# --------------------------------------------------------------------------
# pallas_call builder (one compile per distinct static shape tuple)
# --------------------------------------------------------------------------
@functools.lru_cache(maxsize=None)
def _build_attention_call(B, Bb, P, E, A):
    kernel = functools.partial(_attention_kernel, block_b=Bb)
    grid_spec = pltpu.PrefetchScalarGridSpec(
        num_scalar_prefetch=0,
        grid=(B // Bb,),
        in_specs=[
            pl.BlockSpec((Bb, P, E), lambda i: (i, 0, 0)),   # encoder_out bf16
            pl.BlockSpec((Bb, 1, A), lambda i: (i, 0, 0)),   # att2 (+folded bias)
            pl.BlockSpec((E, A), lambda i: (0, 0)),          # We (bf16)
            pl.BlockSpec((1, A), lambda i: (0, 0)),          # wf row (f32)
        ],
        out_specs=[
            pl.BlockSpec((Bb, 1, E), lambda i: (i, 0, 0)),   # awe
            pl.BlockSpec((Bb, 1, P), lambda i: (i, 0, 0)),   # alpha (lane-dense)
        ],
    )
    return pl.pallas_call(
        kernel,
        out_shape=(jax.ShapeDtypeStruct((B, 1, E), jnp.float32),
                   jax.ShapeDtypeStruct((B, 1, P), jnp.float32)),
        grid_spec=grid_spec,
        compiler_params=pltpu.CompilerParams(
            dimension_semantics=("parallel",),
            # per-step footprint: 2*Bb*P*E*2 (double-buffered bf16 enc)
            # + Bb*P*A*4 (att1/tanh) + ~E*A*2 weights  -- a few hundred KiB,
            # far under the 32 MiB scoped default on every generation.
            vmem_limit_bytes=32 * 1024 * 1024,
        ),
    )


def _pick_batch_block(B, P, E, A, vmem_budget=8 * 1024 * 1024):
    """Largest Bb dividing B, <= 8, <= B//2 (>=2 grid steps for v7x's 2 TCs),
    and fitting a conservative per-step VMEM budget."""
    if B <= 1:
        return 1
    per_elem = 2 * P * E * 2 + P * A * 4 + 2 * (E + P) * 4
    cap = max(1, min(8, B // 2, vmem_budget // max(per_elem, 1)))
    for bb in range(cap, 0, -1):
        if B % bb == 0:
            return bb
    return 1


# --------------------------------------------------------------------------
# One-time parameter preparation (outside the hot path)
# --------------------------------------------------------------------------
def prepare_attention_params(params):
    return {
        "We": params["We"].astype(jnp.bfloat16),                       # (E, A)
        "Wd": params["Wd"].astype(jnp.float32),                        # (D, A)
        "b_sum": (params["be"] + params["bd"]).astype(jnp.float32),    # folded
        "wf": params["wf"].reshape(1, -1).astype(jnp.float32),         # (1, A)
        # full_att bias dropped: softmax-invariant, never reaches the outputs.
    }


# --------------------------------------------------------------------------
# Forward wrapper: no padding copies, decoder projection hoisted
# --------------------------------------------------------------------------
@jax.jit
def attention_forward(prepared, encoder_out, decoder_hidden):
    B, P, E = encoder_out.shape
    A = prepared["We"].shape[1]

    # encoder features stream into the kernel as bf16 (no-op if already bf16)
    enc = (encoder_out if encoder_out.dtype == jnp.bfloat16
           else encoder_out.astype(jnp.bfloat16))

    # decoder projection for the whole batch: one tiny GEMM, biases folded
    att2 = (jnp.dot(decoder_hidden.astype(jnp.float32), prepared["Wd"],
                    preferred_element_type=jnp.float32)
            + prepared["b_sum"])[:, None, :]                           # (B,1,A)

    Bb = _pick_batch_block(B, P, E, A)
    call = _build_attention_call(B, Bb, P, E, A)
    awe, alpha = call(enc, att2, prepared["We"], prepared["wf"])
    return awe.reshape(B, E), alpha.reshape(B, P)


# --------------------------------------------------------------------------
# Pure-JAX reference (mirrors the kernel's bf16 MXU operands)
# --------------------------------------------------------------------------
def attention_reference(params, encoder_out, decoder_hidden):
    enc = encoder_out.astype(jnp.float32)
    att1 = jnp.dot(enc.astype(jnp.bfloat16), params["We"].astype(jnp.bfloat16),
                   preferred_element_type=jnp.float32) + params["be"]
    att2 = jnp.dot(decoder_hidden.astype(jnp.float32), params["Wd"]) + params["bd"]
    att = jnp.sum(jnp.tanh(att1 + att2[:, None, :]) * params["wf"],
                  axis=-1) + params["bf"]
    alpha = jax.nn.softmax(att, axis=1)
    awe = jnp.sum(enc * alpha[..., None], axis=1)
    return awe, alpha


# --------------------------------------------------------------------------
# Deterministic parameter construction (nn.Linear default init, weights
# stored transposed as (in, out))
# --------------------------------------------------------------------------
def init_attention_params(key, encoder_dim, decoder_dim, attention_dim):
    def linear(kw, kb, fan_in, fan_out):
        bound = 1.0 / (fan_in ** 0.5)
        w = jax.random.uniform(kw, (fan_in, fan_out), jnp.float32, -bound, bound)
        b = jax.random.uniform(kb, (fan_out,), jnp.float32, -bound, bound)
        return w, b

    k1, k2, k3, k4, k5, k6 = jax.random.split(key, 6)
    We, be = linear(k1, k2, encoder_dim, attention_dim)
    Wd, bd = linear(k3, k4, decoder_dim, attention_dim)
    wf, bf = linear(k5, k6, attention_dim, 1)
    return {"We": We, "be": be, "Wd": Wd, "bd": bd,
            "wf": wf.reshape(-1), "bf": bf}


# --------------------------------------------------------------------------
if __name__ == "__main__":
    key = jax.random.PRNGKey(0)
    k_enc, k_dec, k_par = jax.random.split(key, 3)

    # 14x14 encoded image (196 pixels); B=4 exercises batch blocking (Bb=2, grid=2)
    B, P, E, D, A = 4, 196, 256, 128, 128
    encoder_out = jax.random.normal(k_enc, (B, P, E), jnp.float32).astype(jnp.bfloat16)
    decoder_hidden = jax.random.normal(k_dec, (B, D), jnp.float32)
    params = init_attention_params(k_par, E, D, A)
    prepared = prepare_attention_params(params)

    awe, alpha = attention_forward(prepared, encoder_out, decoder_hidden)
    awe, alpha = jax.block_until_ready((awe, alpha))

    awe_ref, alpha_ref = attention_reference(params, encoder_out, decoder_hidden)

    assert awe.shape == (B, E), awe.shape
    assert alpha.shape == (B, P), alpha.shape
    assert bool(jnp.all(jnp.isfinite(awe)))
    assert bool(jnp.all(jnp.isfinite(alpha)))
    # approx reciprocal is used for the softmax normalization -> slightly looser
    assert bool(jnp.allclose(jnp.sum(alpha, axis=1), 1.0, atol=3e-3))
    assert bool(jnp.allclose(alpha, alpha_ref, atol=2e-2, rtol=2e-2))
    assert bool(jnp.allclose(awe, awe_ref, atol=2e-2, rtol=2e-2))
    print("KERNEL_OK")
</pallas_src>

<mosaic_0001>
module attributes {stable_mosaic.version = 11 : i64} {
  func.func @_attention_kernel(%arg0: i32, %arg1: memref<2x196x256xbf16, #tpu.memory_space<vmem>>, %arg2: memref<2x1x128xf32, #tpu.memory_space<vmem>>, %arg3: memref<256x128xbf16, #tpu.memory_space<vmem>>, %arg4: memref<1x128xf32, #tpu.memory_space<vmem>>, %arg5: memref<2x1x256xf32, #tpu.memory_space<vmem>>, %arg6: memref<2x1x196xf32, #tpu.memory_space<vmem>>) attributes {dimension_semantics = [#tpu.dimension_semantics<parallel>], iteration_bounds = array<i64: 2>, scalar_prefetch = 0 : i64, scratch_operands = 0 : i64, tpu.core_type = #tpu.core_type<tc>, window_params = [{transform_indices = @transform_0, window_bounds = array<i64: 2, 196, 256>}, {transform_indices = @transform_1, window_bounds = array<i64: 2, 1, 128>}, {pipeline_mode = #tpu.pipeline_mode<synchronous>, transform_indices = @transform_2, window_bounds = array<i64: 256, 128>}, {pipeline_mode = #tpu.pipeline_mode<synchronous>, transform_indices = @transform_3, window_bounds = array<i64: 1, 128>}, {transform_indices = @transform_4, window_bounds = array<i64: 2, 1, 256>}, {transform_indices = @transform_5, window_bounds = array<i64: 2, 1, 196>}]} {
    %c0 = arith.constant 0 : index
    %c0_0 = arith.constant 0 : index
    %0 = vector.load %arg3[%c0, %c0_0] : memref<256x128xbf16, #tpu.memory_space<vmem>>, vector<256x128xbf16>
    %c0_1 = arith.constant 0 : index
    %c0_2 = arith.constant 0 : index
    %1 = vector.load %arg4[%c0_1, %c0_2] : memref<1x128xf32, #tpu.memory_space<vmem>>, vector<1x128xf32>
    %c0_3 = arith.constant 0 : index
    %c0_4 = arith.constant 0 : index
    %c0_5 = arith.constant 0 : index
    %2 = vector.load %arg1[%c0_3, %c0_4, %c0_5] : memref<2x196x256xbf16, #tpu.memory_space<vmem>>, vector<1x196x256xbf16>
    %3 = vector.shape_cast %2 : vector<1x196x256xbf16> to vector<196x256xbf16>
    %cst = arith.constant dense<0.000000e+00> : vector<196x128xf32>
    %4 = tpu.matmul %3, %0, %cst {dimension_numbers = #tpu.dot_dimension_numbers<[1], [0], [0], [1], [0, 0, 1, 1], [], []>} : vector<196x256xbf16>, vector<256x128xbf16>, vector<196x128xf32> -> vector<196x128xf32>
    %c0_6 = arith.constant 0 : index
    %c0_7 = arith.constant 0 : index
    %c0_8 = arith.constant 0 : index
    %5 = vector.load %arg2[%c0_6, %c0_7, %c0_8] : memref<2x1x128xf32, #tpu.memory_space<vmem>>, vector<1x1x128xf32>
    %6 = vector.shape_cast %5 : vector<1x1x128xf32> to vector<1x128xf32>
    %7 = vector.broadcast %6 : vector<1x128xf32> to vector<196x128xf32>
    %8 = arith.addf %4, %7 : vector<196x128xf32>
    %9 = math.tanh %8 : vector<196x128xf32>
    %cst_9 = arith.constant dense<0.000000e+00> : vector<1x196xf32>
    %10 = tpu.matmul %1, %9, %cst_9 {dimension_numbers = #tpu.dot_dimension_numbers<[1], [1], [0], [0], [0, 0, 1, 0], [], []>} : vector<1x128xf32>, vector<196x128xf32>, vector<1x196xf32> -> vector<1x196xf32>
    %cst_10 = arith.constant dense<0xFF800000> : vector<1xf32>
    %11 = vector.multi_reduction <maximumf>, %10, %cst_10 [1] : vector<1x196xf32> to vector<1xf32>
    %12 = vector.shape_cast %11 : vector<1xf32> to vector<1x1xf32>
    %13 = vector.broadcast %12 : vector<1x1xf32> to vector<1x196xf32>
    %14 = arith.subf %10, %13 : vector<1x196xf32>
    %15 = math.exp %14 : vector<1x196xf32>
    %cst_11 = arith.constant dense<0.000000e+00> : vector<1xf32>
    %16 = vector.multi_reduction <add>, %15, %cst_11 [1] : vector<1x196xf32> to vector<1xf32>
    %17 = vector.shape_cast %16 : vector<1xf32> to vector<1x1xf32>
    %18 = tpu.reciprocal %17 {approx = true} : vector<1x1xf32> -> vector<1x1xf32>
    %19 = arith.truncf %15 : vector<1x196xf32> to vector<1x196xbf16>
    %cst_12 = arith.constant dense<0.000000e+00> : vector<1x256xf32>
    %20 = tpu.matmul %19, %3, %cst_12 {dimension_numbers = #tpu.dot_dimension_numbers<[1], [0], [0], [1], [0, 0, 1, 1], [], []>} : vector<1x196xbf16>, vector<196x256xbf16>, vector<1x256xf32> -> vector<1x256xf32>
    %21 = vector.broadcast %18 : vector<1x1xf32> to vector<1x256xf32>
    %22 = arith.mulf %20, %21 : vector<1x256xf32>
    %c0_13 = arith.constant 0 : index
    %c0_14 = arith.constant 0 : index
    %c0_15 = arith.constant 0 : index
    %23 = vector.load %arg5[%c0_13, %c0_14, %c0_15] : memref<2x1x256xf32, #tpu.memory_space<vmem>>, vector<1x1x256xf32>
    %24 = vector.shape_cast %23 : vector<1x1x256xf32> to vector<1x256xf32>
    %25 = vector.shape_cast %22 : vector<1x256xf32> to vector<1x1x256xf32>
    tpu.vector_store %arg5[%c0_13, %c0_14, %c0_15], %25 {strides = array<i32>} : memref<2x1x256xf32, #tpu.memory_space<vmem>>, vector<1x1x256xf32>,
    %26 = vector.broadcast %18 : vector<1x1xf32> to vector<1x196xf32>
    %27 = arith.mulf %15, %26 : vector<1x196xf32>
    %c0_16 = arith.constant 0 : index
    %c0_17 = arith.constant 0 : index
    %c0_18 = arith.constant 0 : index
    %28 = vector.load %arg6[%c0_16, %c0_17, %c0_18] : memref<2x1x196xf32, #tpu.memory_space<vmem>>, vector<1x1x196xf32>
    %29 = vector.shape_cast %28 : vector<1x1x196xf32> to vector<1x196xf32>
    %30 = vector.shape_cast %27 : vector<1x196xf32> to vector<1x1x196xf32>
    tpu.vector_store %arg6[%c0_16, %c0_17, %c0_18], %30 {strides = array<i32>} : memref<2x1x196xf32, #tpu.memory_space<vmem>>, vector<1x1x196xf32>,
    %c1 = arith.constant 1 : index
    %c0_19 = arith.constant 0 : index
    %c0_20 = arith.constant 0 : index
    %31 = vector.load %arg1[%c1, %c0_19, %c0_20] : memref<2x196x256xbf16, #tpu.memory_space<vmem>>, vector<1x196x256xbf16>
    %32 = vector.shape_cast %31 : vector<1x196x256xbf16> to vector<196x256xbf16>
    %cst_21 = arith.constant dense<0.000000e+00> : vector<196x128xf32>
    %33 = tpu.matmul %32, %0, %cst_21 {dimension_numbers = #tpu.dot_dimension_numbers<[1], [0], [0], [1], [0, 0, 1, 1], [], []>} : vector<196x256xbf16>, vector<256x128xbf16>, vector<196x128xf32> -> vector<196x128xf32>
    %c1_22 = arith.constant 1 : index
    %c0_23 = arith.constant 0 : index
    %c0_24 = arith.constant 0 : index
    %34 = vector.load %arg2[%c1_22, %c0_23, %c0_24] : memref<2x1x128xf32, #tpu.memory_space<vmem>>, vector<1x1x128xf32>
    %35 = vector.shape_cast %34 : vector<1x1x128xf32> to vector<1x128xf32>
    %36 = vector.broadcast %35 : vector<1x128xf32> to vector<196x128xf32>
    %37 = arith.addf %33, %36 : vector<196x128xf32>
    %38 = math.tanh %37 : vector<196x128xf32>
    %cst_25 = arith.constant dense<0.000000e+00> : vector<1x196xf32>
    %39 = tpu.matmul %1, %38, %cst_25 {dimension_numbers = #tpu.dot_dimension_numbers<[1], [1], [0], [0], [0, 0, 1, 0], [], []>} : vector<1x128xf32>, vector<196x128xf32>, vector<1x196xf32> -> vector<1x196xf32>
    %cst_26 = arith.constant dense<0xFF800000> : vector<1xf32>
    %40 = vector.multi_reduction <maximumf>, %39, %cst_26 [1] : vector<1x196xf32> to vector<1xf32>
    %41 = vector.shape_cast %40 : vector<1xf32> to vector<1x1xf32>
    %42 = vector.broadcast %41 : vector<1x1xf32> to vector<1x196xf32>
    %43 = arith.subf %39, %42 : vector<1x196xf32>
    %44 = math.exp %43 : vector<1x196xf32>
    %cst_27 = arith.constant dense<0.000000e+00> : vector<1xf32>
    %45 = vector.multi_reduction <add>, %44, %cst_27 [1] : vector<1x196xf32> to vector<1xf32>
    %46 = vector.shape_cast %45 : vector<1xf32> to vector<1x1xf32>
    %47 = tpu.reciprocal %46 {approx = true} : vector<1x1xf32> -> vector<1x1xf32>
    %48 = arith.truncf %44 : vector<1x196xf32> to vector<1x196xbf16>
    %cst_28 = arith.constant dense<0.000000e+00> : vector<1x256xf32>
    %49 = tpu.matmul %48, %32, %cst_28 {dimension_numbers = #tpu.dot_dimension_numbers<[1], [0], [0], [1], [0, 0, 1, 1], [], []>} : vector<1x196xbf16>, vector<196x256xbf16>, vector<1x256xf32> -> vector<1x256xf32>
    %50 = vector.broadcast %47 : vector<1x1xf32> to vector<1x256xf32>
    %51 = arith.mulf %49, %50 : vector<1x256xf32>
    %c1_29 = arith.constant 1 : index
    %c0_30 = arith.constant 0 : index
    %c0_31 = arith.constant 0 : index
    %52 = vector.load %arg5[%c1_29, %c0_30, %c0_31] : memref<2x1x256xf32, #tpu.memory_space<vmem>>, vector<1x1x256xf32>
    %53 = vector.shape_cast %52 : vector<1x1x256xf32> to vector<1x256xf32>
    %54 = vector.shape_cast %51 : vector<1x256xf32> to vector<1x1x256xf32>
    tpu.vector_store %arg5[%c1_29, %c0_30, %c0_31], %54 {strides = array<i32>} : memref<2x1x256xf32, #tpu.memory_space<vmem>>, vector<1x1x256xf32>,
    %55 = vector.broadcast %47 : vector<1x1xf32> to vector<1x196xf32>
    %56 = arith.mulf %44, %55 : vector<1x196xf32>
    %c1_32 = arith.constant 1 : index
    %c0_33 = arith.constant 0 : index
    %c0_34 = arith.constant 0 : index
    %57 = vector.load %arg6[%c1_32, %c0_33, %c0_34] : memref<2x1x196xf32, #tpu.memory_space<vmem>>, vector<1x1x196xf32>
    %58 = vector.shape_cast %57 : vector<1x1x196xf32> to vector<1x196xf32>
    %59 = vector.shape_cast %56 : vector<1x196xf32> to vector<1x1x196xf32>
    tpu.vector_store %arg6[%c1_32, %c0_33, %c0_34], %59 {strides = array<i32>} : memref<2x1x196xf32, #tpu.memory_space<vmem>>, vector<1x1x196xf32>,
    return
  }
  func.func @transform_0(%arg0: i32) -> (i32, i32, i32) {
    %c0_i32 = arith.constant 0 : i32
    %c0_i32_0 = arith.constant 0 : i32
    %c0_i32_1 = arith.constant 0 : i32
    return %arg0, %c0_i32, %c0_i32_0 : i32, i32, i32
  }
  func.func @transform_1(%arg0: i32) -> (i32, i32, i32) {
    %c0_i32 = arith.constant 0 : i32
    %c0_i32_0 = arith.constant 0 : i32
    %c0_i32_1 = arith.constant 0 : i32
    return %arg0, %c0_i32, %c0_i32_0 : i32, i32, i32
  }
  func.func @transform_2(%arg0: i32) -> (i32, i32) {
    %c0_i32 = arith.constant 0 : i32
    %c0_i32_0 = arith.constant 0 : i32
    %c0_i32_1 = arith.constant 0 : i32
    return %c0_i32, %c0_i32_0 : i32, i32
  }
  func.func @transform_3(%arg0: i32) -> (i32, i32) {
    %c0_i32 = arith.constant 0 : i32
    %c0_i32_0 = arith.constant 0 : i32
    %c0_i32_1 = arith.constant 0 : i32
    return %c0_i32, %c0_i32_0 : i32, i32
  }
  func.func @transform_4(%arg0: i32) -> (i32, i32, i32) {
    %c0_i32 = arith.constant 0 : i32
    %c0_i32_0 = arith.constant 0 : i32
    %c0_i32_1 = arith.constant 0 : i32
    return %arg0, %c0_i32, %c0_i32_0 : i32, i32, i32
  }
  func.func @transform_5(%arg0: i32) -> (i32, i32, i32) {
    %c0_i32 = arith.constant 0 : i32
    %c0_i32_0 = arith.constant 0 : i32
    %c0_i32_1 = arith.constant 0 : i32
    return %arg0, %c0_i32, %c0_i32_0 : i32, i32, i32
  }
}

</mosaic_0001>

<llo_original>
// kernel: attention_forward.1
$region0: #{attention_forward.1}
  #allocation0 [shape = 'u32[]', space=smem, size = 0x4, offset = 0x4, fixed_abs, tag = 'smem constant byte address 0x4 - core index']
  #allocation1 [shape = 'u32[144,128]{1,0:T(1,128)}', space=vmem, size = 0x12000, scoped, tag = 'internal scratch']
  %s0 = inlined_call_operand.vmem [shape: bf16[4,196,256], index: 0, kind: input, shape index: {}]
  %s1 = inlined_call_operand.vmem [shape: f32[4,1,128], index: 1, kind: input, shape index: {}]
  %s2 = inlined_call_operand.vmem [shape: bf16[256,128], index: 2, kind: input, shape index: {}]
  %s3 = inlined_call_operand.vmem [shape: f32[1,128], index: 3, kind: input, shape index: {}]
  %s4 = inlined_call_operand.vmem [shape: f32[4,1,256], index: 4, kind: output, shape index: {0}]
  %s5 = inlined_call_operand.vmem [shape: f32[4,1,196], index: 5, kind: output, shape index: {1}]
  %6 = xla_tuple %s4, %s5
  %s7 = sld [smem:[#allocation0]]
  $region57: #{attention_forward.1} parent=0
    _
  %s9 = ssub.s32 1, %s7
  %s10 = scalar_select 0, %s9, %s7
  loop: start=0, step=1, limit=4
  $region2: #{attention_forward.1} parent=0 // loop_pre_header
    _
  $region3: #{attention_forward.1} parent=0 // loop_header
    %s12 = sphi 0, %s16
    %p13 = scmp.ge.s32.totalorder %s12, 4
    %s22 = sphi 0, %s24
    %s25 = sphi 0, %s22
    %s26 = sphi 0, %s25
    %s42 = sphi 0, %s26
    %s48 = sphi 0, %s50
    %s51 = sphi 0, %s48
    %s52 = sphi 0, %s51
    %s68 = sphi 0, %s52
    %s72 = sphi 0, %s72
    %s74 = sphi 0, %s72
    %s75 = sphi 0, %s74
    %s89 = sphi 0, %s75
    %s93 = sphi 0, %s93
    %s95 = sphi 0, %s93
    %s96 = sphi 0, %s95
    %s110 = sphi 0, %s96
    %s116 = sphi 0, %s118
    %s119 = sphi 0, %s116
    %s120 = sphi 0, %s119
    %s136 = sphi 0, %s120
    %s142 = sphi 0, %s144
    %s145 = sphi 0, %s142
    %s146 = sphi 0, %s145
    %s162 = sphi 0, %s146
  $region4: #{attention_forward.1} parent=0 // loop_header_branch
    %15 = sbr.rel (%p13) target = $region8
  $region5: #{attention_forward.1} parent=0 // loop_body
    %s17 = ssub.s32 %s12, 1
    %s18 = ssub.s32 %s12, 2
    %s19 = sadd.s32 %s12, 1
    %s20 = ssub.s32 %s12, %s19
    %p21 = scmp.eq.s32.totalorder %s20, 0
    %s23 = sadd.s32 %s22, 1
    %s24 = scalar_select %p21, %s22, %s23
    %p27 = pneg %p21
    %p28 = scmp.eq.s32.totalorder %s12, 1
    %p29 = por %p27, %p28
    %p30 = scmp.ne.s32.totalorder %s22, %s25
    %p31 = scmp.eq.s32.totalorder %s12, 0
    %p32 = por %p30, %p31
    %p33 = scmp.ne.s32.totalorder %s22, %s25
    %p34 = scmp.eq.s32.totalorder %s17, 1
    %p35 = por %p33, %p34
    %p36 = scmp.ne.s32.totalorder %s25, %s26
    %p37 = scmp.eq.s32.totalorder %s17, 0
    %p38 = por %p36, %p37
    %p39 = scmp.ne.s32.totalorder %s25, %s26
    %p40 = scmp.eq.s32.totalorder %s18, 1
    %p41 = por %p39, %p40
    %p43 = scmp.ne.s32.totalorder %s26, %s42
    %p44 = scmp.eq.s32.totalorder %s18, 0
    %p45 = por %p43, %p44
    %s46 = ssub.s32 %s12, %s19
    %p47 = scmp.eq.s32.totalorder %s46, 0
    %s49 = sadd.s32 %s48, 1
    %s50 = scalar_select %p47, %s48, %s49
    %p53 = pneg %p47
    %p54 = scmp.eq.s32.totalorder %s12, 1
    %p55 = por %p53, %p54
    %p56 = scmp.ne.s32.totalorder %s48, %s51
    %p57 = scmp.eq.s32.totalorder %s12, 0
    %p58 = por %p56, %p57
    %p59 = scmp.ne.s32.totalorder %s48, %s51
    %p60 = scmp.eq.s32.totalorder %s17, 1
    %p61 = por %p59, %p60
    %p62 = scmp.ne.s32.totalorder %s51, %s52
    %p63 = scmp.eq.s32.totalorder %s17, 0
    %p64 = por %p62, %p63
    %p65 = scmp.ne.s32.totalorder %s51, %s52
    %p66 = scmp.eq.s32.totalorder %s18, 1
    %p67 = por %p65, %p66
    %p69 = scmp.ne.s32.totalorder %s52, %s68
    %p70 = scmp.eq.s32.totalorder %s18, 0
    %p71 = por %p69, %p70
    %s73 = sadd.s32 %s72, 1
    %p76 = scmp.eq.s32.totalorder %s12, 1
    %p77 = scmp.ne.s32.totalorder %s72, %s74
    %p78 = scmp.eq.s32.totalorder %s12, 0
    %p79 = por %p77, %p78
    %p80 = scmp.ne.s32.totalorder %s72, %s74
    %p81 = scmp.eq.s32.totalorder %s17, 1
    %p82 = por %p80, %p81
    %p83 = scmp.ne.s32.totalorder %s74, %s75
    %p84 = scmp.eq.s32.totalorder %s17, 0
    %p85 = por %p83, %p84
    %p86 = scmp.ne.s32.totalorder %s74, %s75
    %p87 = scmp.eq.s32.totalorder %s18, 1
    %p88 = por %p86, %p87
    %p90 = scmp.ne.s32.totalorder %s75, %s89
    %p91 = scmp.eq.s32.totalorder %s18, 0
    %p92 = por %p90, %p91
    %s94 = sadd.s32 %s93, 1
    %p97 = scmp.eq.s32.totalorder %s12, 1
    %p98 = scmp.ne.s32.totalorder %s93, %s95
    %p99 = scmp.eq.s32.totalorder %s12, 0
    %p100 = por %p98, %p99
    %p101 = scmp.ne.s32.totalorder %s93, %s95
    %p102 = scmp.eq.s32.totalorder %s17, 1
    %p103 = por %p101, %p102
    %p104 = scmp.ne.s32.totalorder %s95, %s96
    %p105 = scmp.eq.s32.totalorder %s17, 0
    %p106 = por %p104, %p105
    %p107 = scmp.ne.s32.totalorder %s95, %s96
    %p108 = scmp.eq.s32.totalorder %s18, 1
    %p109 = por %p107, %p108
    %p111 = scmp.ne.s32.totalorder %s96, %s110
    %p112 = scmp.eq.s32.totalorder %s18, 0
    %p113 = por %p111, %p112
    %s114 = ssub.s32 %s12, %s19
    %p115 = scmp.eq.s32.totalorder %s114, 0
    %s117 = sadd.s32 %s116, 1
    %s118 = scalar_select %p115, %s116, %s117
    %p121 = pneg %p115
    %p122 = scmp.eq.s32.totalorder %s12, 1
    %p123 = por %p121, %p122
    %p124 = scmp.ne.s32.totalorder %s116, %s119
    %p125 = scmp.eq.s32.totalorder %s12, 0
    %p126 = por %p124, %p125
    %p127 = scmp.ne.s32.totalorder %s116, %s119
    %p128 = scmp.eq.s32.totalorder %s17, 1
    %p129 = por %p127, %p128
    %p130 = scmp.ne.s32.totalorder %s119, %s120
    %p131 = scmp.eq.s32.totalorder %s17, 0
    %p132 = por %p130, %p131
    %p133 = scmp.ne.s32.totalorder %s119, %s120
    %p134 = scmp.eq.s32.totalorder %s18, 1
    %p135 = por %p133, %p134
    %p137 = scmp.ne.s32.totalorder %s120, %s136
    %p138 = scmp.eq.s32.totalorder %s18, 0
    %p139 = por %p137, %p138
    %s140 = ssub.s32 %s12, %s19
    %p141 = scmp.eq.s32.totalorder %s140, 0
    %s143 = sadd.s32 %s142, 1
    %s144 = scalar_select %p141, %s142, %s143
    %p147 = pneg %p141
    %p148 = scmp.eq.s32.totalorder %s12, 1
    %p149 = por %p147, %p148
    %p150 = scmp.ne.s32.totalorder %s142, %s145
    %p151 = scmp.eq.s32.totalorder %s12, 0
    %p152 = por %p150, %p151
    %p153 = scmp.ne.s32.totalorder %s142, %s145
    %p154 = scmp.eq.s32.totalorder %s17, 1
    %p155 = por %p153, %p154
    %p156 = scmp.ne.s32.totalorder %s145, %s146
    %p157 = scmp.eq.s32.totalorder %s17, 0
    %p158 = por %p156, %p157
    %p159 = scmp.ne.s32.totalorder %s145, %s146
    %p160 = scmp.eq.s32.totalorder %s18, 1
    %p161 = por %p159, %p160
    %p163 = scmp.ne.s32.totalorder %s146, %s162
    %p164 = scmp.eq.s32.totalorder %s18, 0
    %p165 = por %p163, %p164
    %p166 = scmp.le.s32.totalorder 1, %s12
    %p167 = scmp.lt.s32.totalorder %s12, 3
    %p168 = pnand %p166, %p167
    %p169 = pneg %p168
    // Predicated region
    $region9: #{attention_forward.1} parent=5 // pred_check
      _
    $region10: #{attention_forward.1} parent=5 // pred_check_branch
      %171 = sbr.rel (%p168) target = $region12
    $region11: #{attention_forward.1} parent=5 // pred_region
      %s172 = ssub.s32 %s12, 1
      // Predicated region
      $region13: #{attention_forward.1} parent=11 // pred_check
        %p173 = pneg %p85
      $region14: #{attention_forward.1} parent=11 // pred_check_branch
        %175 = sbr.rel (%p173) target = $region16
      $region15: #{attention_forward.1} parent=11 // pred_region
        _
      $region16: #{attention_forward.1} parent=11 // pred_fallthru
        _
      // Predicated region
      $region17: #{attention_forward.1} parent=11 // pred_check
        %p176 = pneg %p106
      $region18: #{attention_forward.1} parent=11 // pred_check_branch
        %178 = sbr.rel (%p176) target = $region20
      $region19: #{attention_forward.1} parent=11 // pred_region
        _
      $region20: #{attention_forward.1} parent=11 // pred_fallthru
        _
    $region12: #{attention_forward.1} parent=5 // pred_fallthru
      _
    %p179 = scmp.lt.s32.totalorder %s12, 2
    // Predicated region
    $region21: #{attention_forward.1} parent=5 // pred_check
      %p180 = pneg %p179
    $region22: #{attention_forward.1} parent=5 // pred_check_branch
      %182 = sbr.rel (%p180) target = $region24
    $region23: #{attention_forward.1} parent=5 // pred_region
      // Predicated region
      $region25: #{attention_forward.1} parent=23 // pred_check
        %p183 = pneg %p32
      $region26: #{attention_forward.1} parent=23 // pred_check_branch
        %185 = sbr.rel (%p183) target = $region28
      $region27: #{attention_forward.1} parent=23 // pred_region
        %s186 = smul.u32 2, %s12
        %p187 = scmp.lt.s32.totalorder %s186, 3
        %s188 = scalar_select %p187, %s186, 3
        %s189 = smul.addr %s188, 50
        %s190 = smul.addr %s189, 4
        %s191 = scalar_lea.vmem %s0, %s190
        %s192 = smul.u32 2, %s12
      $region28: #{attention_forward.1} parent=23 // pred_fallthru
        _
      // Predicated region
      $region29: #{attention_forward.1} parent=23 // pred_check
        %p193 = pneg %p58
      $region30: #{attention_forward.1} parent=23 // pred_check_branch
        %195 = sbr.rel (%p193) target = $region32
      $region31: #{attention_forward.1} parent=23 // pred_region
        %s196 = smul.u32 2, %s12
        %p197 = scmp.lt.s32.totalorder %s196, 3
        %s198 = scalar_select %p197, %s196, 3
        %s199 = scalar_lea.vmem %s1, %s198
        %s200 = smul.u32 2, %s12
      $region32: #{attention_forward.1} parent=23 // pred_fallthru
        _
    $region24: #{attention_forward.1} parent=5 // pred_fallthru
      _
    %p201 = scmp.le.s32.totalorder 1, %s12
    %p202 = scmp.lt.s32.totalorder %s12, 3
    %p203 = pnand %p201, %p202
    %p204 = pneg %p203
    // Predicated region
    $region33: #{attention_forward.1} parent=5 // pred_check
      _
    $region34: #{attention_forward.1} parent=5 // pred_check_branch
      %206 = sbr.rel (%p203) target = $region36
    $region35: #{attention_forward.1} parent=5 // pred_region
      %s207 = ssub.s32 %s12, 1
      %s208 = smul.u32 2, %s17
      %p209 = scmp.lt.s32.totalorder %s208, 3
      %s210 = scalar_select %p209, %s208, 3
      %s211 = smul.addr %s210, 50
      %s212 = smul.addr %s211, 4
      %s213 = scalar_lea.vmem %s0, %s212
      %p214 = pneg %p38
      %p215 = pneg %p35
      %s216 = smul.u32 2, %s17
      %p217 = scmp.lt.s32.totalorder %s216, 3
      %s218 = scalar_select %p217, %s216, 3
      %s219 = scalar_lea.vmem %s1, %s218
      %p220 = pneg %p64
      %p221 = pneg %p61
      %p222 = pneg %p85
      %p223 = pneg %p82
      %p224 = pneg %p106
      %p225 = pneg %p103
      %p226 = pneg %p132
      %p227 = pneg %p129
      %s228 = smul.u32 2, %s17
      %p229 = scmp.lt.s32.totalorder %s228, 3
      %s230 = scalar_select %p229, %s228, 3
      %s231 = smul.addr %s230, 2
      %s232 = scalar_lea.vmem %s4, %s231
      %p233 = pneg %p158
      %p234 = pneg %p155
      %s235 = smul.u32 2, %s17
      %p236 = scmp.lt.s32.totalorder %s235, 3
      %s237 = scalar_select %p236, %s235, 3
      %s238 = smul.addr %s237, 2
      %s239 = scalar_lea.vmem %s5, %s238
      %s240 = smul.u32 2, %s17
      %p241 = scmp.lt.s32.totalorder %s240, 3
      %s242 = scalar_select %p241, %s240, 3
      %s243 = smul.addr %s242, 50
      %s244 = smul.addr %s243, 4
      %s245 = scalar_lea.vmem %s0, %s244
      %s246 = smul.u32 2, %s17
      %s247 = smul.u32 2, %s17
      %p248 = scmp.lt.s32.totalorder %s247, 3
      %s249 = scalar_select %p248, %s247, 3
      %s250 = scalar_lea.vmem %s1, %s249
      %s251 = smul.u32 2, %s17
      %s252 = smul.u32 2, %s17
      %p253 = scmp.lt.s32.totalorder %s252, 3
      %s254 = scalar_select %p253, %s252, 3
      %s255 = smul.addr %s254, 2
      %s256 = scalar_lea.vmem %s4, %s255
      %s257 = smul.u32 2, %s17
      %s258 = smul.u32 2, %s17
      %p259 = scmp.lt.s32.totalorder %s258, 3
      %s260 = scalar_select %p259, %s258, 3
      %s261 = smul.addr %s260, 2
      %s262 = scalar_lea.vmem %s5, %s261
      %s263 = smul.u32 2, %s17
      %v265 = vld [vmem:[%s2] sm:$0xf]
      %v266 = vld [vmem:[%s2 + $0x4] sm:$0xf]
      %v267 = vld [vmem:[%s2 + $0x8] sm:$0xf]
      %v268 = vld [vmem:[%s2 + $0xc] sm:$0xf]
      %v269 = vld [vmem:[%s2 + $0x10] sm:$0xf]
      %v270 = vld [vmem:[%s2 + $0x14] sm:$0xf]
      %v271 = vld [vmem:[%s2 + $0x18] sm:$0xf]
      %v272 = vld [vmem:[%s2 + $0x1c] sm:$0xf]
      %v273 = vld [vmem:[%s2 + $0x20] sm:$0xf]
      %v274 = vld [vmem:[%s2 + $0x24] sm:$0xf]
      %v275 = vld [vmem:[%s2 + $0x28] sm:$0xf]
      %v276 = vld [vmem:[%s2 + $0x2c] sm:$0xf]
      %v277 = vld [vmem:[%s2 + $0x30] sm:$0xf]
      %v278 = vld [vmem:[%s2 + $0x34] sm:$0xf]
      %v279 = vld [vmem:[%s2 + $0x38] sm:$0xf]
      %v280 = vld [vmem:[%s2 + $0x3c] sm:$0xf]
      %v281 = vld [vmem:[%s2 + $0x40] sm:$0xf]
      %v282 = vld [vmem:[%s2 + $0x44] sm:$0xf]
      %v283 = vld [vmem:[%s2 + $0x48] sm:$0xf]
      %v284 = vld [vmem:[%s2 + $0x4c] sm:$0xf]
      %v285 = vld [vmem:[%s2 + $0x50] sm:$0xf]
      %v286 = vld [vmem:[%s2 + $0x54] sm:$0xf]
      %v287 = vld [vmem:[%s2 + $0x58] sm:$0xf]
      %v288 = vld [vmem:[%s2 + $0x5c] sm:$0xf]
      %v289 = vld [vmem:[%s2 + $0x60] sm:$0xf]
      %v290 = vld [vmem:[%s2 + $0x64] sm:$0xf]
      %v291 = vld [vmem:[%s2 + $0x68] sm:$0xf]
      %v292 = vld [vmem:[%s2 + $0x6c] sm:$0xf]
      %v293 = vld [vmem:[%s2 + $0x70] sm:$0xf]
      %v294 = vld [vmem:[%s2 + $0x74] sm:$0xf]
      %v295 = vld [vmem:[%s2 + $0x78] sm:$0xf]
      %v296 = vld [vmem:[%s2 + $0x7c] sm:$0xf]
      %v297 = vld [vmem:[%s3] sm:$0x1]
      %v298 = vld [vmem:[%s245] sm:$0xff]
      %v299 = vld [vmem:[%s245 + $0x8] sm:$0xff]
      %v300 = vld [vmem:[%s245 + $0x10] sm:$0xff]
      %v301 = vld [vmem:[%s245 + $0x18] sm:$0xff]
      %v302 = vld [vmem:[%s245 + $0x20] sm:$0xff]
      %v303 = vld [vmem:[%s245 + $0x28] sm:$0xff]
      %v304 = vld [vmem:[%s245 + $0x30] sm:$0xff]
      %v305 = vld [vmem:[%s245 + $0x38] sm:$0xff]
      %v306 = vld [vmem:[%s245 + $0x40] sm:$0xff]
      %v307 = vld [vmem:[%s245 + $0x48] sm:$0xff]
      %v308 = vld [vmem:[%s245 + $0x50] sm:$0xff]
      %v309 = vld [vmem:[%s245 + $0x58] sm:$0xff]
      %v310 = vld [vmem:[%s245 + $0x60] sm:$0xff]
      %v311 = vld [vmem:[%s245 + $0x68] sm:$0xff]
      %v312 = vld [vmem:[%s245 + $0x70] sm:$0xff]
      %v313 = vld [vmem:[%s245 + $0x78] sm:$0xff]
      %v314 = vld [vmem:[%s245 + $0x80] sm:$0xff]
      %v315 = vld [vmem:[%s245 + $0x88] sm:$0xff]
      %v316 = vld [vmem:[%s245 + $0x90] sm:$0xff]
      %v317 = vld [vmem:[%s245 + $0x98] sm:$0xff]
      %v318 = vld [vmem:[%s245 + $0xa0] sm:$0xff]
      %v319 = vld [vmem:[%s245 + $0xa8] sm:$0xff]
      %v320 = vld [vmem:[%s245 + $0xb0] sm:$0xff]
      %v321 = vld [vmem:[%s245 + $0xb8] sm:$0xff]
      %v322 = vld [vmem:[%s245 + $0xc0] sm:$0x33]
      %v323 = vld [vmem:[%s250] sm:$0x1]
      %v325 = vlaneseq
      %v326 = vshrl.u32 %v325, 7
      %v327 = vsub.s32 0, %v326
      %v328 = vrot.slane %v323, %v327
      %v355 = vunpack.c.l.b16 %v298
      %v356 = vunpack.c.h.b16 %v298
      %v357 = vunpack.c.l.b16 %v299
      %v358 = vunpack.c.h.b16 %v299
      %v359 = vunpack.c.l.b16 %v300
      %v360 = vunpack.c.h.b16 %v300
      %v361 = vunpack.c.l.b16 %v301
      %v362 = vunpack.c.h.b16 %v301
      %v363 = vunpack.c.l.b16 %v302
      %v364 = vunpack.c.h.b16 %v302
      %v365 = vunpack.c.l.b16 %v303
      %v366 = vunpack.c.h.b16 %v303
      %v367 = vunpack.c.l.b16 %v304
      %v368 = vunpack.c.h.b16 %v304
      %v369 = vunpack.c.l.b16 %v305
      %v370 = vunpack.c.h.b16 %v305
      %v371 = vunpack.c.l.b16 %v306
      %v372 = vunpack.c.h.b16 %v306
      %v373 = vunpack.c.l.b16 %v307
      %v374 = vunpack.c.h.b16 %v307
      %v375 = vunpack.c.l.b16 %v308
      %v376 = vunpack.c.h.b16 %v308
      %v377 = vunpack.c.l.b16 %v309
      %v378 = vunpack.c.h.b16 %v309
      %v379 = vunpack.c.l.b16 %v310
      %v380 = vunpack.c.h.b16 %v310
      %v381 = vunpack.c.l.b16 %v311
      %v382 = vunpack.c.h.b16 %v311
      %v383 = vunpack.c.l.b16 %v312
      %v384 = vunpack.c.h.b16 %v312
      %v385 = vunpack.c.l.b16 %v313
      %v386 = vunpack.c.h.b16 %v313
      %v387 = vunpack.c.l.b16 %v314
      %v388 = vunpack.c.h.b16 %v314
      %v389 = vunpack.c.l.b16 %v315
      %v390 = vunpack.c.h.b16 %v315
      %v391 = vunpack.c.l.b16 %v316
      %v392 = vunpack.c.h.b16 %v316
      %v393 = vunpack.c.l.b16 %v317
      %v394 = vunpack.c.h.b16 %v317
      %v395 = vunpack.c.l.b16 %v318
      %v396 = vunpack.c.h.b16 %v318
      %v397 = vunpack.c.l.b16 %v319
      %v398 = vunpack.c.h.b16 %v319
      %v399 = vunpack.c.l.b16 %v320
      %v400 = vunpack.c.h.b16 %v320
      %v401 = vunpack.c.l.b16 %v321
      %v402 = vunpack.c.h.b16 %v321
      %v403 = vunpack.c.l.b16 %v322
      %v404 = vunpack.c.h.b16 %v322
      %v405 = vpack.c.b16 %v357, %v355
      %v406 = vpack.c.b16 %v358, %v356
      %v407 = vpack.c.b16 %v361, %v359
      %v408 = vpack.c.b16 %v362, %v360
      %v409 = vpack.c.b16 %v365, %v363
      %v410 = vpack.c.b16 %v366, %v364
      %v411 = vpack.c.b16 %v369, %v367
      %v412 = vpack.c.b16 %v370, %v368
      %v413 = vpack.c.b16 %v373, %v371
      %v414 = vpack.c.b16 %v374, %v372
      %v415 = vpack.c.b16 %v377, %v375
      %v416 = vpack.c.b16 %v378, %v376
      %v417 = vpack.c.b16 %v381, %v379
      %v418 = vpack.c.b16 %v382, %v380
      %v419 = vpack.c.b16 %v385, %v383
      %v420 = vpack.c.b16 %v386, %v384
      %v421 = vpack.c.b16 %v389, %v387
      %v422 = vpack.c.b16 %v390, %v388
      %v423 = vpack.c.b16 %v393, %v391
      %v424 = vpack.c.b16 %v394, %v392
      %v425 = vpack.c.b16 %v397, %v395
      %v426 = vpack.c.b16 %v398, %v396
      %v427 = vpack.c.b16 %v401, %v399
      %v428 = vpack.c.b16 %v402, %v400
      %v429 = vpack.c.b16 %v403, %v403
      %v430 = vpack.c.b16 %v404, %v404
      %v489 = vunpack.c.l.b16 %v265
      %v490 = vunpack.c.l.b16 %v266
      %v491 = vunpack.c.l.b16 %v267
      %v492 = vunpack.c.l.b16 %v268
      %v493 = vunpack.c.l.b16 %v269
      %v494 = vunpack.c.l.b16 %v270
      %v495 = vunpack.c.l.b16 %v271
      %v496 = vunpack.c.l.b16 %v272
      %v497 = vunpack.c.l.b16 %v273
      %v498 = vunpack.c.l.b16 %v274
      %v499 = vunpack.c.l.b16 %v275
      %v500 = vunpack.c.l.b16 %v276
      %v501 = vunpack.c.l.b16 %v277
      %v502 = vunpack.c.l.b16 %v278
      %v503 = vunpack.c.l.b16 %v279
      %v504 = vunpack.c.l.b16 %v280
      %v505 = vunpack.c.l.b16 %v281
      %v506 = vunpack.c.l.b16 %v282
      %v507 = vunpack.c.l.b16 %v283
      %v508 = vunpack.c.l.b16 %v284
      %v509 = vunpack.c.l.b16 %v285
      %v510 = vunpack.c.l.b16 %v286
      %v511 = vunpack.c.l.b16 %v287
      %v512 = vunpack.c.l.b16 %v288
      %v513 = vunpack.c.l.b16 %v289
      %v514 = vunpack.c.l.b16 %v290
      %v515 = vunpack.c.l.b16 %v291
      %v516 = vunpack.c.l.b16 %v292
      %v517 = vunpack.c.l.b16 %v293
      %v518 = vunpack.c.l.b16 %v294
      %v519 = vunpack.c.l.b16 %v295
      %v520 = vunpack.c.l.b16 %v296
      %v521 = vpack.c.b16 %v490, %v489
      %v522 = vpack.c.b16 %v492, %v491
      %v523 = vpack.c.b16 %v494, %v493
      %v524 = vpack.c.b16 %v496, %v495
      %v525 = vpack.c.b16 %v498, %v497
      %v526 = vpack.c.b16 %v500, %v499
      %v527 = vpack.c.b16 %v502, %v501
      %v528 = vpack.c.b16 %v504, %v503
      %v529 = vpack.c.b16 %v506, %v505
      %v530 = vpack.c.b16 %v508, %v507
      %v531 = vpack.c.b16 %v510, %v509
      %v532 = vpack.c.b16 %v512, %v511
      %v533 = vpack.c.b16 %v514, %v513
      %v534 = vpack.c.b16 %v516, %v515
      %v535 = vpack.c.b16 %v518, %v517
      %v536 = vpack.c.b16 %v520, %v519
      %553 = vmatprep.subr.bf16.mxu0 0
      %554 = vmatpush1.bf16.msra.mxu0 %v521
      %555 = vmatprep.subr.bf16.mxu0 0
      %556 = vmatpush1.bf16.msra.mxu0 %v522
      %557 = vmatprep.subr.bf16.mxu0 0
      %558 = vmatpush1.bf16.msra.mxu0 %v523
      %559 = vmatprep.subr.bf16.mxu0 0
      %560 = vmatpush1.bf16.msra.mxu0 %v524
      %561 = vmatprep.subr.bf16.mxu0 0
      %562 = vmatpush1.bf16.msra.mxu0 %v525
      %563 = vmatprep.subr.bf16.mxu0 0
      %564 = vmatpush1.bf16.msra.mxu0 %v526
      %565 = vmatprep.subr.bf16.mxu0 0
      %566 = vmatpush1.bf16.msra.mxu0 %v527
      %567 = vmatprep.subr.bf16.mxu0 0
      %568 = vmatpush1.bf16.msra.mxu0 %v528
      %569 = vmatprep.subr.bf16.mxu0 0
      %570 = vmatpush1.bf16.msra.mxu0 %v529
      %571 = vmatprep.subr.bf16.mxu0 0
      %572 = vmatpush1.bf16.msra.mxu0 %v530
      %573 = vmatprep.subr.bf16.mxu0 0
      %574 = vmatpush1.bf16.msra.mxu0 %v531
      %575 = vmatprep.subr.bf16.mxu0 0
      %576 = vmatpush1.bf16.msra.mxu0 %v532
      %577 = vmatprep.subr.bf16.mxu0 0
      %578 = vmatpush1.bf16.msra.mxu0 %v533
      %579 = vmatprep.subr.bf16.mxu0 0
      %580 = vmatpush1.bf16.msra.mxu0 %v534
      %581 = vmatprep.subr.bf16.mxu0 0
      %582 = vmatpush1.bf16.msra.mxu0 %v535
      %583 = vmatprep.subr.bf16.mxu0 0
      %584 = vmatpush1.bf16.msra.mxu0 %v536
      %585 = vmatprep.mubr.bf16.mxu0 %v406
      %586 = vmatmul.mubr.bf16.gmra.mrb[0].mxu0 %v405
      %v587 = vpop.f32.mrb[0].mxu0
      %v588 = vadd.f32 %v328, %v587
      %v589 = vpop.f32.mrb[0].mxu0
      %v590 = vpop.f32.mrb[0].mxu0
      %v591 = vadd.f32 %v328, %v590
      %v592 = vpop.f32.mrb[0].mxu0
      %593 = vmatprep.mubr.bf16.mxu0 %v408
      %594 = vmatmul.mubr.bf16.gmra.mrb[0].mxu0 %v407
      %v595 = vpop.f32.mrb[0].mxu0
      %v596 = vadd.f32 %v328, %v595
      %v597 = vpop.f32.mrb[0].mxu0
      %v598 = vpop.f32.mrb[0].mxu0
      %v599 = vadd.f32 %v328, %v598
      %v600 = vpop.f32.mrb[0].mxu0
      %601 = vmatprep.mubr.bf16.mxu0 %v410
      %602 = vmatmul.mubr.bf16.gmra.mrb[0].mxu0 %v409
      %v603 = vpop.f32.mrb[0].mxu0
      %v604 = vadd.f32 %v328, %v603
      %v605 = vpop.f32.mrb[0].mxu0
      %v606 = vpop.f32.mrb[0].mxu0
      %v607 = vadd.f32 %v328, %v606
      %v608 = vpop.f32.mrb[0].mxu0
      %609 = vmatprep.mubr.bf16.mxu0 %v412
      %610 = vmatmul.mubr.bf16.gmra.mrb[0].mxu0 %v411
      %v611 = vpop.f32.mrb[0].mxu0
      %v612 = vadd.f32 %v328, %v611
      %v613 = vpop.f32.mrb[0].mxu0
      %v614 = vpop.f32.mrb[0].mxu0
      %v615 = vadd.f32 %v328, %v614
      %v616 = vpop.f32.mrb[0].mxu0
      %617 = vmatprep.mubr.bf16.mxu0 %v414
      %618 = vmatmul.mubr.bf16.gmra.mrb[0].mxu0 %v413
      %v619 = vpop.f32.mrb[0].mxu0
      %v620 = vadd.f32 %v328, %v619
      %v621 = vpop.f32.mrb[0].mxu0
      %v622 = vpop.f32.mrb[0].mxu0
      %v623 = vadd.f32 %v328, %v622
      %v624 = vpop.f32.mrb[0].mxu0
      %625 = vmatprep.mubr.bf16.mxu0 %v416
      %626 = vmatmul.mubr.bf16.gmra.mrb[0].mxu0 %v415
      %v627 = vpop.f32.mrb[0].mxu0
      %v628 = vadd.f32 %v328, %v627
      %v629 = vpop.f32.mrb[0].mxu0
      %v630 = vpop.f32.mrb[0].mxu0
      %v631 = vadd.f32 %v328, %v630
      %v632 = vpop.f32.mrb[0].mxu0
      %633 = vmatprep.mubr.bf16.mxu0 %v418
      %634 = vmatmul.mubr.bf16.gmra.mrb[0].mxu0 %v417
      %v635 = vpop.f32.mrb[0].mxu0
      %v636 = vadd.f32 %v328, %v635
      %v637 = vpop.f32.mrb[0].mxu0
      %v638 = vpop.f32.mrb[0].mxu0
      %v639 = vadd.f32 %v328, %v638
      %v640 = vpop.f32.mrb[0].mxu0
      %641 = vmatprep.mubr.bf16.mxu0 %v420
      %642 = vmatmul.mubr.bf16.gmra.mrb[0].mxu0 %v419
      %v643 = vpop.f32.mrb[0].mxu0
      %v644 = vadd.f32 %v328, %v643
      %v645 = vpop.f32.mrb[0].mxu0
      %v646 = vpop.f32.mrb[0].mxu0
      %v647 = vadd.f32 %v328, %v646
      %v648 = vpop.f32.mrb[0].mxu0
      %649 = vmatprep.mubr.bf16.mxu0 %v422
      %650 = vmatmul.mubr.bf16.gmra.mrb[0].mxu0 %v421
      %v651 = vpop.f32.mrb[0].mxu0
      %v652 = vadd.f32 %v328, %v651
      %v653 = vpop.f32.mrb[0].mxu0
      %v654 = vpop.f32.mrb[0].mxu0
      %v655 = vadd.f32 %v328, %v654
      %v656 = vpop.f32.mrb[0].mxu0
      %657 = vmatprep.mubr.bf16.mxu0 %v424
      %658 = vmatmul.mubr.bf16.gmra.mrb[0].mxu0 %v423
      %v659 = vpop.f32.mrb[0].mxu0
      %v660 = vadd.f32 %v328, %v659
      %v661 = vpop.f32.mrb[0].mxu0
      %v662 = vpop.f32.mrb[0].mxu0
      %v663 = vadd.f32 %v328, %v662
      %v664 = vpop.f32.mrb[0].mxu0
      %665 = vmatprep.mubr.bf16.mxu0 %v426
      %666 = vmatmul.mubr.bf16.gmra.mrb[0].mxu0 %v425
      %v667 = vpop.f32.mrb[0].mxu0
      %v668 = vadd.f32 %v328, %v667
      %v669 = vpop.f32.mrb[0].mxu0
      %v670 = vpop.f32.mrb[0].mxu0
      %v671 = vadd.f32 %v328, %v670
      %v672 = vpop.f32.mrb[0].mxu0
      %673 = vmatprep.mubr.bf16.mxu0 %v428
      %674 = vmatmul.mubr.bf16.gmra.mrb[0].mxu0 %v427
      %v675 = vpop.f32.mrb[0].mxu0
      %v676 = vadd.f32 %v328, %v675
      %v677 = vpop.f32.mrb[0].mxu0
      %v678 = vpop.f32.mrb[0].mxu0
      %v679 = vadd.f32 %v328, %v678
      %v680 = vpop.f32.mrb[0].mxu0
      %681 = vmatprep.mubr.bf16.mxu0 %v430
      %682 = vmatmul.mubr.bf16.gmra.mrb[0].mxu0 %v429
      %v683 = vpop.f32.mrb[0].mxu0
      %v684 = vadd.f32 %v328, %v683
      %v685 = vpop.f32.mrb[0].mxu0
      %v686 = vpop.f32.mrb[0].mxu0
      %v687 = vpop.f32.mrb[0].mxu0
      %688 = vdwg.mxu0
      %v689 = vtanh.pop %v588
      %v690 = vtanh.pop %v591
      %v691 = vtanh.pop %v596
      %v692 = vtanh.pop %v599
      %v693 = vtanh.pop %v604
      %v694 = vtanh.pop %v607
      %v695 = vtanh.pop %v612
      %v696 = vtanh.pop %v615
      %v697 = vtanh.pop %v620
      %v698 = vtanh.pop %v623
      %v699 = vtanh.pop %v628
      %v700 = vtanh.pop %v631
      %v701 = vtanh.pop %v636
      %v702 = vtanh.pop %v639
      %v703 = vtanh.pop %v644
      %v704 = vtanh.pop %v647
      %v705 = vtanh.pop %v652
      %v706 = vtanh.pop %v655
      %v707 = vtanh.pop %v660
      %v708 = vtanh.pop %v663
      %v709 = vtanh.pop %v668
      %v710 = vtanh.pop %v671
      %v711 = vtanh.pop %v676
      %v712 = vtanh.pop %v679
      %v713 = vtanh.pop %v684
      %714 = vmatprep.subr.mxu0 0.0
      %715 = vmatpush1.xpose.msra.mxu0 %v689
      %716 = vmatprep.subr.mxu0 0.0
      %717 = vmatpush1.xpose.msra.mxu0 %v690
      %718 = vmatprep.subr.mxu0 0.0
      %719 = vmatpush1.xpose.msra.mxu0 %v691
      %720 = vmatprep.subr.mxu0 0.0
      %721 = vmatpush1.xpose.msra.mxu0 %v692
      %722 = vmatprep.subr.mxu0 0.0
      %723 = vmatpush1.xpose.msra.mxu0 %v693
      %724 = vmatprep.subr.mxu0 0.0
      %725 = vmatpush1.xpose.msra.mxu0 %v694
      %726 = vmatprep.subr.mxu0 0.0
      %727 = vmatpush1.xpose.msra.mxu0 %v695
      %728 = vmatprep.subr.mxu0 0.0
      %729 = vmatpush1.xpose.msra.mxu0 %v696
      %730 = vmatprep.subr.mxu0 0.0
      %731 = vmatpush1.xpose.msra.mxu0 %v697
      %732 = vmatprep.subr.mxu0 0.0
      %733 = vmatpush1.xpose.msra.mxu0 %v698
      %734 = vmatprep.subr.mxu0 0.0
      %735 = vmatpush1.xpose.msra.mxu0 %v699
      %736 = vmatprep.subr.mxu0 0.0
      %737 = vmatpush1.xpose.msra.mxu0 %v700
      %738 = vmatprep.subr.mxu0 0.0
      %739 = vmatpush1.xpose.msra.mxu0 %v701
      %740 = vmatprep.subr.mxu0 0.0
      %741 = vmatpush1.xpose.msra.mxu0 %v702
      %742 = vmatprep.subr.mxu0 0.0
      %743 = vmatpush1.xpose.msra.mxu0 %v703
      %744 = vmatprep.subr.mxu0 0.0
      %745 = vmatpush1.xpose.msra.mxu0 %v704
      %746 = vmatprep.subr.mxu0 0.0
      %747 = vmatpush1.xpose.msra.mxu0 %v705
      %748 = vmatprep.subr.mxu0 0.0
      %749 = vmatpush1.xpose.msra.mxu0 %v706
      %750 = vmatprep.subr.mxu0 0.0
      %751 = vmatpush1.xpose.msra.mxu0 %v707
      %752 = vmatprep.subr.mxu0 0.0
      %753 = vmatpush1.xpose.msra.mxu0 %v708
      %754 = vmatprep.subr.mxu0 0.0
      %755 = vmatpush1.xpose.msra.mxu0 %v709
      %756 = vmatprep.subr.mxu0 0.0
      %757 = vmatpush1.xpose.msra.mxu0 %v710
      %758 = vmatprep.subr.mxu0 0.0
      %759 = vmatpush1.xpose.msra.mxu0 %v711
      %760 = vmatprep.subr.mxu0 0.0
      %761 = vmatpush1.xpose.msra.mxu0 %v712
      %762 = vmatprep.subr.mxu0 0.0
      %763 = vmatpush1.xpose.msra.mxu0 %v713
      %764 = vmatprep.subr.mxu0 0.0
      %765 = vmatpush1.xpose.msra.mxu0 0.0
      %766 = vmatprep.subr.mxu0 0.0
      %767 = vmatpush1.xpose.msra.mxu0 0.0
      %768 = vmatprep.subr.mxu0 0.0
      %769 = vmatpush1.xpose.msra.mxu0 0.0
      %770 = vmatprep.subr.mxu0 0.0
      %771 = vmatpush1.xpose.msra.mxu0 0.0
      %772 = vmatprep.subr.mxu0 0.0
      %773 = vmatpush1.xpose.msra.mxu0 0.0
      %774 = vmatprep.subr.mxu0 0.0
      %775 = vmatpush1.xpose.msra.mxu0 0.0
      %776 = vmatprep.subr.mxu0 0.0
      %777 = vmatpush1.xpose.msra.mxu0 0.0
      %778 = vmatprep.mubr.f32.mxu0 0.0
      %779 = vmatmul.mubr.f32.gmra.mrb[0].mxu0 %v297
      %v780 = vpop.f32.mrb[0].mxu0
      %v781 = vadd.f32 0.0, %v780
      %v782 = vpop.f32.mrb[0].mxu0
      %v783 = vadd.f32 0.0, %v782
      %784 = vdwg.mxu0
      %vm785 = vcmask 1040384
      %v786 = vsel %vm785, %v781, -inf
      %vm787 = vcmask 548864
      %v788 = vsel %vm787, %v783, -inf
      %v789 = vmax.f32 %v786, %v788
      %790 = vmax.xlane.f32.xlu0 %v789
      %v791 = vpop.xlane.xlu0 %790
      %v792 = vsub.f32 %v781, %v791
      %v793 = vsub.f32 %v783, %v791
      %v794 = vmul.f32 %v792, 1.442695
      %v795 = vpow.pop %v794
      %v796 = vmul.f32 %v793, 1.442695
      %v797 = vpow.pop %v796
      %v798 = vsel %vm785, %v795, 0.0
      %v799 = vsel %vm787, %v797, 0.0
      %v800 = vadd.f32 %v798, %v799
      %801 = vadd.xlane.f32.xlu0 %v800
      %v802 = vpop.xlane.xlu0 %801
      %v803 = vrcp.pop %v802
      %v804 = vpack.c.bf16 %v795, %v795
      %v805 = vpack.c.bf16 %v797, %v797
      %vm806 = vcmask 556032
      %v808 = vsel %vm806, %v805, 0
      %vm810 = vcmask 1041408
      %v812 = vsel %vm810, %v429, 0
      %v815 = vsel %vm810, %v430, 0
      %817 = vmatprep.subr.bf16.mxu0 %v406
      %818 = vmatpush1.bf16.msra.mxu0 %v405
      %819 = vmatprep.subr.bf16.mxu0 %v408
      %820 = vmatpush1.bf16.msra.mxu0 %v407
      %821 = vmatprep.subr.bf16.mxu0 %v410
      %822 = vmatpush1.bf16.msra.mxu0 %v409
      %823 = vmatprep.subr.bf16.mxu0 %v412
      %824 = vmatpush1.bf16.msra.mxu0 %v411
      %825 = vmatprep.subr.bf16.mxu0 %v414
      %826 = vmatpush1.bf16.msra.mxu0 %v413
      %827 = vmatprep.subr.bf16.mxu0 %v416
      %828 = vmatpush1.bf16.msra.mxu0 %v415
      %829 = vmatprep.subr.bf16.mxu0 %v418
      %830 = vmatpush1.bf16.msra.mxu0 %v417
      %831 = vmatprep.subr.bf16.mxu0 %v420
      %832 = vmatpush1.bf16.msra.mxu0 %v419
      %833 = vmatprep.subr.bf16.mxu0 %v422
      %834 = vmatpush1.bf16.msra.mxu0 %v421
      %835 = vmatprep.subr.bf16.mxu0 %v424
      %836 = vmatpush1.bf16.msra.mxu0 %v423
      %837 = vmatprep.subr.bf16.mxu0 %v426
      %838 = vmatpush1.bf16.msra.mxu0 %v425
      %839 = vmatprep.subr.bf16.mxu0 %v428
      %840 = vmatpush1.bf16.msra.mxu0 %v427
      %841 = vmatprep.subr.bf16.mxu0 %v815
      %842 = vmatpush1.bf16.msra.mxu0 %v812
      %843 = vmatprep.subr.bf16.mxu0 0
      %844 = vmatpush1.bf16.msra.mxu0 0
      %845 = vmatprep.subr.bf16.mxu0 0
      %846 = vmatpush1.bf16.msra.mxu0 0
      %847 = vmatprep.subr.bf16.mxu0 0
      %848 = vmatpush1.bf16.msra.mxu0 0
      %849 = vmatprep.mubr.bf16.mxu0 %v808
      %850 = vmatmul.mubr.bf16.gmra.mrb[0].mxu0 %v804
      %v851 = vpop.f32.mrb[0].mxu0
      %v852 = vadd.f32 0.0, %v851
      %v853 = vpop.f32.mrb[0].mxu0
      %v854 = vadd.f32 0.0, %v853
      %v855 = vpop.f32.mrb[0].mxu0
      %v856 = vpop.f32.mrb[0].mxu0
      %857 = vdwg.mxu0
      %v858 = vmul.f32 %v852, %v803
      %v859 = vmul.f32 %v854, %v803
      %v862 = vcombine.low %v858, %v859
      %v864 = vunpack.c.l.s4 1966171168
      %v865 = vunpack.c.0.s8 %v864
      %v866 = vlaneseq
      %v867 = vshrl.u32 %v866, 7
      %v868 = vsub.s32 %v865, %v867
      %v869 = vrot.slane %v862, %v868
      %v871 = vunpack.c.l.s4 1966171168
      %v872 = vunpack.c.0.s8 %v871
      %v873 = vlaneseq
      %v874 = vshrl.u32 %v873, 7
      %v875 = vsub.s32 %v872, %v874
      %v876 = vrot.slane %v869, %v875
      %v878 = vlaneseq
      %vm879 = vcmp.ge.s32.totalorder %v878, 0
      %vm880 = vcmp.lt.s32.totalorder %v878, 256
      %vm881 = vmand %vm879, %vm880
      %882 = vst.msk [vmem:[%s256] sm:$0x3] %vm881, %v876
      %v883 = vmul.f32 %v795, %v803
      %v884 = vmul.f32 %v797, %v803
      %v887 = vcombine.low %v883, %v884
      %v889 = vunpack.c.l.s4 1966171168
      %v890 = vunpack.c.0.s8 %v889
      %v891 = vlaneseq
      %v892 = vshrl.u32 %v891, 7
      %v893 = vsub.s32 %v890, %v892
      %v894 = vrot.slane %v887, %v893
      %v896 = vunpack.c.l.s4 1966171168
      %v897 = vunpack.c.0.s8 %v896
      %v898 = vlaneseq
      %v899 = vshrl.u32 %v898, 7
      %v900 = vsub.s32 %v897, %v899
      %v901 = vrot.slane %v894, %v900
      %vm903 = vcmp.lt.s32.totalorder %v878, 196
      %vm904 = vmand %vm879, %vm903
      %905 = vst.msk [vmem:[%s262] sm:$0x3] %vm904, %v901
      %s906 = scalar_lea.vmem %s245, 200
      %v907 = vld [vmem:[%s906] sm:$0xff]
      %v908 = vld [vmem:[%s906 + $0x8] sm:$0xff]
      %v909 = vld [vmem:[%s906 + $0x10] sm:$0xff]
      %v910 = vld [vmem:[%s906 + $0x18] sm:$0xff]
      %v911 = vld [vmem:[%s906 + $0x20] sm:$0xff]
      %v912 = vld [vmem:[%s906 + $0x28] sm:$0xff]
      %v913 = vld [vmem:[%s906 + $0x30] sm:$0xff]
      %v914 = vld [vmem:[%s906 + $0x38] sm:$0xff]
      %v915 = vld [vmem:[%s906 + $0x40] sm:$0xff]
      %v916 = vld [vmem:[%s906 + $0x48] sm:$0xff]
      %v917 = vld [vmem:[%s906 + $0x50] sm:$0xff]
      %v918 = vld [vmem:[%s906 + $0x58] sm:$0xff]
      %v919 = vld [vmem:[%s906 + $0x60] sm:$0xff]
      %v920 = vld [vmem:[%s906 + $0x68] sm:$0xff]
      %v921 = vld [vmem:[%s906 + $0x70] sm:$0xff]
      %v922 = vld [vmem:[%s906 + $0x78] sm:$0xff]
      %v923 = vld [vmem:[%s906 + $0x80] sm:$0xff]
      %v924 = vld [vmem:[%s906 + $0x88] sm:$0xff]
      %v925 = vld [vmem:[%s906 + $0x90] sm:$0xff]
      %v926 = vld [vmem:[%s906 + $0x98] sm:$0xff]
      %v927 = vld [vmem:[%s906 + $0xa0] sm:$0xff]
      %v928 = vld [vmem:[%s906 + $0xa8] sm:$0xff]
      %v929 = vld [vmem:[%s906 + $0xb0] sm:$0xff]
      %v930 = vld [vmem:[%s906 + $0xb8] sm:$0xff]
      %v931 = vld [vmem:[%s906 + $0xc0] sm:$0x33]
      %s932 = scalar_lea.vmem %s250, 1
      %v933 = vld [vmem:[%s932] sm:$0x1]
      %v935 = vlaneseq
      %v936 = vshrl.u32 %v935, 7
      %v937 = vsub.s32 0, %v936
      %v938 = vrot.slane %v933, %v937
      %v965 = vunpack.c.l.b16 %v907
      %v966 = vunpack.c.h.b16 %v907
      %v967 = vunpack.c.l.b16 %v908
      %v968 = vunpack.c.h.b16 %v908
      %v969 = vunpack.c.l.b16 %v909
      %v970 = vunpack.c.h.b16 %v909
      %v971 = vunpack.c.l.b16 %v910
      %v972 = vunpack.c.h.b16 %v910
      %v973 = vunpack.c.l.b16 %v911
      %v974 = vunpack.c.h.b16 %v911
      %v975 = vunpack.c.l.b16 %v912
      %v976 = vunpack.c.h.b16 %v912
      %v977 = vunpack.c.l.b16 %v913
      %v978 = vunpack.c.h.b16 %v913
      %v979 = vunpack.c.l.b16 %v914
      %v980 = vunpack.c.h.b16 %v914
      %v981 = vunpack.c.l.b16 %v915
      %v982 = vunpack.c.h.b16 %v915
      %v983 = vunpack.c.l.b16 %v916
      %v984 = vunpack.c.h.b16 %v916
      %v985 = vunpack.c.l.b16 %v917
      %v986 = vunpack.c.h.b16 %v917
      %v987 = vunpack.c.l.b16 %v918
      %v988 = vunpack.c.h.b16 %v918
      %v989 = vunpack.c.l.b16 %v919
      %v990 = vunpack.c.h.b16 %v919
      %v991 = vunpack.c.l.b16 %v920
      %v992 = vunpack.c.h.b16 %v920
      %v993 = vunpack.c.l.b16 %v921
      %v994 = vunpack.c.h.b16 %v921
      %v995 = vunpack.c.l.b16 %v922
      %v996 = vunpack.c.h.b16 %v922
      %v997 = vunpack.c.l.b16 %v923
      %v998 = vunpack.c.h.b16 %v923
      %v999 = vunpack.c.l.b16 %v924
      %v1000 = vunpack.c.h.b16 %v924
      %v1001 = vunpack.c.l.b16 %v925
      %v1002 = vunpack.c.h.b16 %v925
      %v1003 = vunpack.c.l.b16 %v926
      %v1004 = vunpack.c.h.b16 %v926
      %v1005 = vunpack.c.l.b16 %v927
      %v1006 = vunpack.c.h.b16 %v927
      %v1007 = vunpack.c.l.b16 %v928
      %v1008 = vunpack.c.h.b16 %v928
      %v1009 = vunpack.c.l.b16 %v929
      %v1010 = vunpack.c.h.b16 %v929
      %v1011 = vunpack.c.l.b16 %v930
      %v1012 = vunpack.c.h.b16 %v930
      %v1013 = vunpack.c.l.b16 %v931
      %v1014 = vunpack.c.h.b16 %v931
      %v1015 = vpack.c.b16 %v967, %v965
      %v1016 = vpack.c.b16 %v968, %v966
      %v1017 = vpack.c.b16 %v971, %v969
      %v1018 = vpack.c.b16 %v972, %v970
      %v1019 = vpack.c.b16 %v975, %v973
      %v1020 = vpack.c.b16 %v976, %v974
      %v1021 = vpack.c.b16 %v979, %v977
      %v1022 = vpack.c.b16 %v980, %v978
      %v1023 = vpack.c.b16 %v983, %v981
      %v1024 = vpack.c.b16 %v984, %v982
      %v1025 = vpack.c.b16 %v987, %v985
      %v1026 = vpack.c.b16 %v988, %v986
      %v1027 = vpack.c.b16 %v991, %v989
      %v1028 = vpack.c.b16 %v992, %v990
      %v1029 = vpack.c.b16 %v995, %v993
      %v1030 = vpack.c.b16 %v996, %v994
      %v1031 = vpack.c.b16 %v999, %v997
      %v1032 = vpack.c.b16 %v1000, %v998
      %v1033 = vpack.c.b16 %v1003, %v1001
      %v1034 = vpack.c.b16 %v1004, %v1002
      %v1035 = vpack.c.b16 %v1007, %v1005
      %v1036 = vpack.c.b16 %v1008, %v1006
      %v1037 = vpack.c.b16 %v1011, %v1009
      %v1038 = vpack.c.b16 %v1012, %v1010
      %v1039 = vpack.c.b16 %v1013, %v1013
      %v1040 = vpack.c.b16 %v1014, %v1014
      %1067 = vmatprep.subr.bf16.mxu0 0
      %1068 = vmatpush1.bf16.msra.mxu0 %v521
      %1069 = vmatprep.subr.bf16.mxu0 0
      %1070 = vmatpush1.bf16.msra.mxu0 %v522
      %1071 = vmatprep.subr.bf16.mxu0 0
      %1072 = vmatpush1.bf16.msra.mxu0 %v523
      %1073 = vmatprep.subr.bf16.mxu0 0
      %1074 = vmatpush1.bf16.msra.mxu0 %v524
      %1075 = vmatprep.subr.bf16.mxu0 0
      %1076 = vmatpush1.bf16.msra.mxu0 %v525
      %1077 = vmatprep.subr.bf16.mxu0 0
      %1078 = vmatpush1.bf16.msra.mxu0 %v526
      %1079 = vmatprep.subr.bf16.mxu0 0
      %1080 = vmatpush1.bf16.msra.mxu0 %v527
      %1081 = vmatprep.subr.bf16.mxu0 0
      %1082 = vmatpush1.bf16.msra.mxu0 %v528
      %1083 = vmatprep.subr.bf16.mxu0 0
      %1084 = vmatpush1.bf16.msra.mxu0 %v529
      %1085 = vmatprep.subr.bf16.mxu0 0
      %1086 = vmatpush1.bf16.msra.mxu0 %v530
      %1087 = vmatprep.subr.bf16.mxu0 0
      %1088 = vmatpush1.bf16.msra.mxu0 %v531
      %1089 = vmatprep.subr.bf16.mxu0 0
      %1090 = vmatpush1.bf16.msra.mxu0 %v532
      %1091 = vmatprep.subr.bf16.mxu0 0
      %1092 = vmatpush1.bf16.msra.mxu0 %v533
      %1093 = vmatprep.subr.bf16.mxu0 0
      %1094 = vmatpush1.bf16.msra.mxu0 %v534
      %1095 = vmatprep.subr.bf16.mxu0 0
      %1096 = vmatpush1.bf16.msra.mxu0 %v535
      %1097 = vmatprep.subr.bf16.mxu0 0
      %1098 = vmatpush1.bf16.msra.mxu0 %v536
      %1099 = vmatprep.mubr.bf16.mxu0 %v1016
      %1100 = vmatmul.mubr.bf16.gmra.mrb[0].mxu0 %v1015
      %v1101 = vpop.f32.mrb[0].mxu0
      %v1102 = vadd.f32 %v938, %v1101
      %v1103 = vpop.f32.mrb[0].mxu0
      %v1104 = vpop.f32.mrb[0].mxu0
      %v1105 = vadd.f32 %v938, %v1104
      %v1106 = vpop.f32.mrb[0].mxu0
      %1107 = vmatprep.mubr.bf16.mxu0 %v1018
      %1108 = vmatmul.mubr.bf16.gmra.mrb[0].mxu0 %v1017
      %v1109 = vpop.f32.mrb[0].mxu0
      %v1110 = vadd.f32 %v938, %v1109
      %v1111 = vpop.f32.mrb[0].mxu0
      %v1112 = vpop.f32.mrb[0].mxu0
      %v1113 = vadd.f32 %v938, %v1112
      %v1114 = vpop.f32.mrb[0].mxu0
      %1115 = vmatprep.mubr.bf16.mxu0 %v1020
      %1116 = vmatmul.mubr.bf16.gmra.mrb[0].mxu0 %v1019
      %v1117 = vpop.f32.mrb[0].mxu0
      %v1118 = vadd.f32 %v938, %v1117
      %v1119 = vpop.f32.mrb[0].mxu0
      %v1120 = vpop.f32.mrb[0].mxu0
      %v1121 = vadd.f32 %v938, %v1120
      %v1122 = vpop.f32.mrb[0].mxu0
      %1123 = vmatprep.mubr.bf16.mxu0 %v1022
      %1124 = vmatmul.mubr.bf16.gmra.mrb[0].mxu0 %v1021
      %v1125 = vpop.f32.mrb[0].mxu0
      %v1126 = vadd.f32 %v938, %v1125
      %v1127 = vpop.f32.mrb[0].mxu0
      %v1128 = vpop.f32.mrb[0].mxu0
      %v1129 = vadd.f32 %v938, %v1128
      %v1130 = vpop.f32.mrb[0].mxu0
      %1131 = vmatprep.mubr.bf16.mxu0 %v1024
      %1132 = vmatmul.mubr.bf16.gmra.mrb[0].mxu0 %v1023
      %v1133 = vpop.f32.mrb[0].mxu0
      %v1134 = vadd.f32 %v938, %v1133
      %v1135 = vpop.f32.mrb[0].mxu0
      %v1136 = vpop.f32.mrb[0].mxu0
      %v1137 = vadd.f32 %v938, %v1136
      %v1138 = vpop.f32.mrb[0].mxu0
      %1139 = vmatprep.mubr.bf16.mxu0 %v1026
      %1140 = vmatmul.mubr.bf16.gmra.mrb[0].mxu0 %v1025
      %v1141 = vpop.f32.mrb[0].mxu0
      %v1142 = vadd.f32 %v938, %v1141
      %v1143 = vpop.f32.mrb[0].mxu0
      %v1144 = vpop.f32.mrb[0].mxu0
      %v1145 = vadd.f32 %v938, %v1144
      %v1146 = vpop.f32.mrb[0].mxu0
      %1147 = vmatprep.mubr.bf16.mxu0 %v1028
      %1148 = vmatmul.mubr.bf16.gmra.mrb[0].mxu0 %v1027
      %v1149 = vpop.f32.mrb[0].mxu0
      %v1150 = vadd.f32 %v938, %v1149
      %v1151 = vpop.f32.mrb[0].mxu0
      %v1152 = vpop.f32.mrb[0].mxu0
      %v1153 = vadd.f32 %v938, %v1152
      %v1154 = vpop.f32.mrb[0].mxu0
      %1155 = vmatprep.mubr.bf16.mxu0 %v1030
      %1156 = vmatmul.mubr.bf16.gmra.mrb[0].mxu0 %v1029
      %v1157 = vpop.f32.mrb[0].mxu0
      %v1158 = vadd.f32 %v938, %v1157
      %v1159 = vpop.f32.mrb[0].mxu0
      %v1160 = vpop.f32.mrb[0].mxu0
      %v1161 = vadd.f32 %v938, %v1160
      %v1162 = vpop.f32.mrb[0].mxu0
      %1163 = vmatprep.mubr.bf16.mxu0 %v1032
      %1164 = vmatmul.mubr.bf16.gmra.mrb[0].mxu0 %v1031
      %v1165 = vpop.f32.mrb[0].mxu0
      %v1166 = vadd.f32 %v938, %v1165
      %v1167 = vpop.f32.mrb[0].mxu0
      %v1168 = vpop.f32.mrb[0].mxu0
      %v1169 = vadd.f32 %v938, %v1168
      %v1170 = vpop.f32.mrb[0].mxu0
      %1171 = vmatprep.mubr.bf16.mxu0 %v1034
      %1172 = vmatmul.mubr.bf16.gmra.mrb[0].mxu0 %v1033
      %v1173 = vpop.f32.mrb[0].mxu0
      %v1174 = vadd.f32 %v938, %v1173
      %v1175 = vpop.f32.mrb[0].mxu0
      %v1176 = vpop.f32.mrb[0].mxu0
      %v1177 = vadd.f32 %v938, %v1176
      %v1178 = vpop.f32.mrb[0].mxu0
      %1179 = vmatprep.mubr.bf16.mxu0 %v1036
      %1180 = vmatmul.mubr.bf16.gmra.mrb[0].mxu0 %v1035
      %v1181 = vpop.f32.mrb[0].mxu0
      %v1182 = vadd.f32 %v938, %v1181
      %v1183 = vpop.f32.mrb[0].mxu0
      %v1184 = vpop.f32.mrb[0].mxu0
      %v1185 = vadd.f32 %v938, %v1184
      %v1186 = vpop.f32.mrb[0].mxu0
      %1187 = vmatprep.mubr.bf16.mxu0 %v1038
      %1188 = vmatmul.mubr.bf16.gmra.mrb[0].mxu0 %v1037
      %v1189 = vpop.f32.mrb[0].mxu0
      %v1190 = vadd.f32 %v938, %v1189
      %v1191 = vpop.f32.mrb[0].mxu0
      %v1192 = vpop.f32.mrb[0].mxu0
      %v1193 = vadd.f32 %v938, %v1192
      %v1194 = vpop.f32.mrb[0].mxu0
      %1195 = vmatprep.mubr.bf16.mxu0 %v1040
      %1196 = vmatmul.mubr.bf16.gmra.mrb[0].mxu0 %v1039
      %v1197 = vpop.f32.mrb[0].mxu0
      %v1198 = vadd.f32 %v938, %v1197
      %v1199 = vpop.f32.mrb[0].mxu0
      %v1200 = vpop.f32.mrb[0].mxu0
      %v1201 = vpop.f32.mrb[0].mxu0
      %1202 = vdwg.mxu0
      %v1203 = vtanh.pop %v1102
      %v1204 = vtanh.pop %v1105
      %v1205 = vtanh.pop %v1110
      %v1206 = vtanh.pop %v1113
      %v1207 = vtanh.pop %v1118
      %v1208 = vtanh.pop %v1121
      %v1209 = vtanh.pop %v1126
      %v1210 = vtanh.pop %v1129
      %v1211 = vtanh.pop %v1134
      %v1212 = vtanh.pop %v1137
      %v1213 = vtanh.pop %v1142
      %v1214 = vtanh.pop %v1145
      %v1215 = vtanh.pop %v1150
      %v1216 = vtanh.pop %v1153
      %v1217 = vtanh.pop %v1158
      %v1218 = vtanh.pop %v1161
      %v1219 = vtanh.pop %v1166
      %v1220 = vtanh.pop %v1169
      %v1221 = vtanh.pop %v1174
      %v1222 = vtanh.pop %v1177
      %v1223 = vtanh.pop %v1182
      %v1224 = vtanh.pop %v1185
      %v1225 = vtanh.pop %v1190
      %v1226 = vtanh.pop %v1193
      %v1227 = vtanh.pop %v1198
      %1228 = vmatprep.subr.mxu0 0.0
      %1229 = vmatpush1.xpose.msra.mxu0 %v1203
      %1230 = vmatprep.subr.mxu0 0.0
      %1231 = vmatpush1.xpose.msra.mxu0 %v1204
      %1232 = vmatprep.subr.mxu0 0.0
      %1233 = vmatpush1.xpose.msra.mxu0 %v1205
      %1234 = vmatprep.subr.mxu0 0.0
      %1235 = vmatpush1.xpose.msra.mxu0 %v1206
      %1236 = vmatprep.subr.mxu0 0.0
      %1237 = vmatpush1.xpose.msra.mxu0 %v1207
      %1238 = vmatprep.subr.mxu0 0.0
      %1239 = vmatpush1.xpose.msra.mxu0 %v1208
      %1240 = vmatprep.subr.mxu0 0.0
      %1241 = vmatpush1.xpose.msra.mxu0 %v1209
      %1242 = vmatprep.subr.mxu0 0.0
      %1243 = vmatpush1.xpose.msra.mxu0 %v1210
      %1244 = vmatprep.subr.mxu0 0.0
      %1245 = vmatpush1.xpose.msra.mxu0 %v1211
      %1246 = vmatprep.subr.mxu0 0.0
      %1247 = vmatpush1.xpose.msra.mxu0 %v1212
      %1248 = vmatprep.subr.mxu0 0.0
      %1249 = vmatpush1.xpose.msra.mxu0 %v1213
      %1250 = vmatprep.subr.mxu0 0.0
      %1251 = vmatpush1.xpose.msra.mxu0 %v1214
      %1252 = vmatprep.subr.mxu0 0.0
      %1253 = vmatpush1.xpose.msra.mxu0 %v1215
      %1254 = vmatprep.subr.mxu0 0.0
      %1255 = vmatpush1.xpose.msra.mxu0 %v1216
      %1256 = vmatprep.subr.mxu0 0.0
      %1257 = vmatpush1.xpose.msra.mxu0 %v1217
      %1258 = vmatprep.subr.mxu0 0.0
      %1259 = vmatpush1.xpose.msra.mxu0 %v1218
      %1260 = vmatprep.subr.mxu0 0.0
      %1261 = vmatpush1.xpose.msra.mxu0 %v1219
      %1262 = vmatprep.subr.mxu0 0.0
      %1263 = vmatpush1.xpose.msra.mxu0 %v1220
      %1264 = vmatprep.subr.mxu0 0.0
      %1265 = vmatpush1.xpose.msra.mxu0 %v1221
      %1266 = vmatprep.subr.mxu0 0.0
      %1267 = vmatpush1.xpose.msra.mxu0 %v1222
      %1268 = vmatprep.subr.mxu0 0.0
      %1269 = vmatpush1.xpose.msra.mxu0 %v1223
      %1270 = vmatprep.subr.mxu0 0.0
      %1271 = vmatpush1.xpose.msra.mxu0 %v1224
      %1272 = vmatprep.subr.mxu0 0.0
      %1273 = vmatpush1.xpose.msra.mxu0 %v1225
      %1274 = vmatprep.subr.mxu0 0.0
      %1275 = vmatpush1.xpose.msra.mxu0 %v1226
      %1276 = vmatprep.subr.mxu0 0.0
      %1277 = vmatpush1.xpose.msra.mxu0 %v1227
      %1278 = vmatprep.subr.mxu0 0.0
      %1279 = vmatpush1.xpose.msra.mxu0 0.0
      %1280 = vmatprep.subr.mxu0 0.0
      %1281 = vmatpush1.xpose.msra.mxu0 0.0
      %1282 = vmatprep.subr.mxu0 0.0
      %1283 = vmatpush1.xpose.msra.mxu0 0.0
      %1284 = vmatprep.subr.mxu0 0.0
      %1285 = vmatpush1.xpose.msra.mxu0 0.0
      %1286 = vmatprep.subr.mxu0 0.0
      %1287 = vmatpush1.xpose.msra.mxu0 0.0
      %1288 = vmatprep.subr.mxu0 0.0
      %1289 = vmatpush1.xpose.msra.mxu0 0.0
      %1290 = vmatprep.subr.mxu0 0.0
      %1291 = vmatpush1.xpose.msra.mxu0 0.0
      %1292 = vmatprep.mubr.f32.mxu0 0.0
      %1293 = vmatmul.mubr.f32.gmra.mrb[0].mxu0 %v297
      %v1294 = vpop.f32.mrb[0].mxu0
      %v1295 = vadd.f32 0.0, %v1294
      %v1296 = vpop.f32.mrb[0].mxu0
      %v1297 = vadd.f32 0.0, %v1296
      %1298 = vdwg.mxu0
      %v1299 = vsel %vm785, %v1295, -inf
      %v1300 = vsel %vm787, %v1297, -inf
      %v1301 = vmax.f32 %v1299, %v1300
      %1302 = vmax.xlane.f32.xlu0 %v1301
      %v1303 = vpop.xlane.xlu0 %1302
      %v1304 = vsub.f32 %v1295, %v1303
      %v1305 = vsub.f32 %v1297, %v1303
      %v1306 = vmul.f32 %v1304, 1.442695
      %v1307 = vpow.pop %v1306
      %v1308 = vmul.f32 %v1305, 1.442695
      %v1309 = vpow.pop %v1308
      %v1310 = vsel %vm785, %v1307, 0.0
      %v1311 = vsel %vm787, %v1309, 0.0
      %v1312 = vadd.f32 %v1310, %v1311
      %1313 = vadd.xlane.f32.xlu0 %v1312
      %v1314 = vpop.xlane.xlu0 %1313
      %v1315 = vrcp.pop %v1314
      %v1316 = vpack.c.bf16 %v1307, %v1307
      %v1317 = vpack.c.bf16 %v1309, %v1309
      %v1319 = vsel %vm806, %v1317, 0
      %v1322 = vsel %vm810, %v1039, 0
      %v1325 = vsel %vm810, %v1040, 0
      %1327 = vmatprep.subr.bf16.mxu0 %v1016
      %1328 = vmatpush1.bf16.msra.mxu0 %v1015
      %1329 = vmatprep.subr.bf16.mxu0 %v1018
      %1330 = vmatpush1.bf16.msra.mxu0 %v1017
      %1331 = vmatprep.subr.bf16.mxu0 %v1020
      %1332 = vmatpush1.bf16.msra.mxu0 %v1019
      %1333 = vmatprep.subr.bf16.mxu0 %v1022
      %1334 = vmatpush1.bf16.msra.mxu0 %v1021
      %1335 = vmatprep.subr.bf16.mxu0 %v1024
      %1336 = vmatpush1.bf16.msra.mxu0 %v1023
      %1337 = vmatprep.subr.bf16.mxu0 %v1026
      %1338 = vmatpush1.bf16.msra.mxu0 %v1025
      %1339 = vmatprep.subr.bf16.mxu0 %v1028
      %1340 = vmatpush1.bf16.msra.mxu0 %v1027
      %1341 = vmatprep.subr.bf16.mxu0 %v1030
      %1342 = vmatpush1.bf16.msra.mxu0 %v1029
      %1343 = vmatprep.subr.bf16.mxu0 %v1032
      %1344 = vmatpush1.bf16.msra.mxu0 %v1031
      %1345 = vmatprep.subr.bf16.mxu0 %v1034
      %1346 = vmatpush1.bf16.msra.mxu0 %v1033
      %1347 = vmatprep.subr.bf16.mxu0 %v1036
      %1348 = vmatpush1.bf16.msra.mxu0 %v1035
      %1349 = vmatprep.subr.bf16.mxu0 %v1038
      %1350 = vmatpush1.bf16.msra.mxu0 %v1037
      %1351 = vmatprep.subr.bf16.mxu0 %v1325
      %1352 = vmatpush1.bf16.msra.mxu0 %v1322
      %1353 = vmatprep.subr.bf16.mxu0 0
      %1354 = vmatpush1.bf16.msra.mxu0 0
      %1355 = vmatprep.subr.bf16.mxu0 0
      %1356 = vmatpush1.bf16.msra.mxu0 0
      %1357 = vmatprep.subr.bf16.mxu0 0
      %1358 = vmatpush1.bf16.msra.mxu0 0
      %1359 = vmatprep.mubr.bf16.mxu0 %v1319
      %1360 = vmatmul.mubr.bf16.gmra.mrb[0].mxu0 %v1316
      %v1361 = vpop.f32.mrb[0].mxu0
      %v1362 = vadd.f32 0.0, %v1361
      %v1363 = vpop.f32.mrb[0].mxu0
      %v1364 = vadd.f32 0.0, %v1363
      %v1365 = vpop.f32.mrb[0].mxu0
      %v1366 = vpop.f32.mrb[0].mxu0
      %1367 = vdwg.mxu0
      %v1368 = vmul.f32 %v1362, %v1315
      %v1369 = vmul.f32 %v1364, %v1315
      %v1372 = vcombine.low %v1368, %v1369
      %v1374 = vunpack.c.l.s4 1966171168
      %v1375 = vunpack.c.0.s8 %v1374
      %v1376 = vlaneseq
      %v1377 = vshrl.u32 %v1376, 7
      %v1378 = vsub.s32 %v1375, %v1377
      %v1379 = vrot.slane %v1372, %v1378
      %v1381 = vunpack.c.l.s4 1966171168
      %v1382 = vunpack.c.0.s8 %v1381
      %v1383 = vlaneseq
      %v1384 = vshrl.u32 %v1383, 7
      %v1385 = vsub.s32 %v1382, %v1384
      %v1386 = vrot.slane %v1379, %v1385
      %s1388 = scalar_lea.vmem %s256, 2
      %1389 = vst.msk [vmem:[%s1388] sm:$0x3] %vm881, %v1386
      %v1390 = vmul.f32 %v1307, %v1315
      %v1391 = vmul.f32 %v1309, %v1315
      %v1394 = vcombine.low %v1390, %v1391
      %v1396 = vunpack.c.l.s4 1966171168
      %v1397 = vunpack.c.0.s8 %v1396
      %v1398 = vlaneseq
      %v1399 = vshrl.u32 %v1398, 7
      %v1400 = vsub.s32 %v1397, %v1399
      %v1401 = vrot.slane %v1394, %v1400
      %v1403 = vunpack.c.l.s4 1966171168
      %v1404 = vunpack.c.0.s8 %v1403
      %v1405 = vlaneseq
      %v1406 = vshrl.u32 %v1405, 7
      %v1407 = vsub.s32 %v1404, %v1406
      %v1408 = vrot.slane %v1401, %v1407
      %s1410 = scalar_lea.vmem %s262, 2
      %1411 = vst.msk [vmem:[%s1410] sm:$0x3] %vm904, %v1408
      %s1412 = smul.u32 2, %s17
      %p1413 = scmp.lt.s32.totalorder %s1412, 3
      %s1414 = scalar_select %p1413, %s1412, 3
      %s1415 = smul.addr %s1414, 2
      %s1416 = scalar_lea.vmem %s4, %s1415
      %s1417 = smul.u32 2, %s17
      %p1418 = scmp.lt.s32.totalorder %s1417, 3
      %s1419 = scalar_select %p1418, %s1417, 3
      %s1420 = smul.addr %s1419, 2
      %s1421 = scalar_lea.vmem %s5, %s1420
      // Predicated region
      $region37: #{attention_forward.1} parent=35 // pred_check
        %p1422 = pneg %p129
      $region38: #{attention_forward.1} parent=35 // pred_check_branch
        %1424 = sbr.rel (%p1422) target = $region40
      $region39: #{attention_forward.1} parent=35 // pred_region
        %s1425 = smul.u32 2, %s17
      $region40: #{attention_forward.1} parent=35 // pred_fallthru
        _
      // Predicated region
      $region41: #{attention_forward.1} parent=35 // pred_check
        %p1426 = pneg %p155
      $region42: #{attention_forward.1} parent=35 // pred_check_branch
        %1428 = sbr.rel (%p1426) target = $region44
      $region43: #{attention_forward.1} parent=35 // pred_region
        %s1429 = smul.u32 2, %s17
      $region44: #{attention_forward.1} parent=35 // pred_fallthru
        _
    $region36: #{attention_forward.1} parent=5 // pred_fallthru
      _
    %p1430 = scmp.le.s32.totalorder 2, %s12
    // Predicated region
    $region45: #{attention_forward.1} parent=5 // pred_check
      %p1431 = pneg %p1430
    $region46: #{attention_forward.1} parent=5 // pred_check_branch
      %1433 = sbr.rel (%p1431) target = $region48
    $region47: #{attention_forward.1} parent=5 // pred_region
      %s1434 = ssub.s32 %s12, 2
      // Predicated region
      $region49: #{attention_forward.1} parent=47 // pred_check
        %p1435 = pneg %p135
      $region50: #{attention_forward.1} parent=47 // pred_check_branch
        %1437 = sbr.rel (%p1435) target = $region52
      $region51: #{attention_forward.1} parent=47 // pred_region
        %s1438 = smul.u32 2, %s18
        %p1439 = scmp.lt.s32.totalorder %s1438, 3
        %s1440 = scalar_select %p1439, %s1438, 3
        %s1441 = smul.addr %s1440, 2
        %s1442 = scalar_lea.vmem %s4, %s1441
      $region52: #{attention_forward.1} parent=47 // pred_fallthru
        _
      // Predicated region
      $region53: #{attention_forward.1} parent=47 // pred_check
        %p1443 = pneg %p161
      $region54: #{attention_forward.1} parent=47 // pred_check_branch
        %1445 = sbr.rel (%p1443) target = $region56
      $region55: #{attention_forward.1} parent=47 // pred_region
        %s1446 = smul.u32 2, %s18
        %p1447 = scmp.lt.s32.totalorder %s1446, 3
        %s1448 = scalar_select %p1447, %s1446, 3
        %s1449 = smul.addr %s1448, 2
        %s1450 = scalar_lea.vmem %s5, %s1449
      $region56: #{attention_forward.1} parent=47 // pred_fallthru
        _
    $region48: #{attention_forward.1} parent=5 // pred_fallthru
      _
  $region6: #{attention_forward.1} parent=0 // loop_footer
    %s16 = sadd.s32 1, %s12
  $region7: #{attention_forward.1} parent=0 // loop_footer_branch
    %11 = sbr.rel target = $region3
  $region8: #{attention_forward.1} parent=0 // loop_exit
    _

</llo_original>
